<compile_context>
chip_gen: v7x
topology: tpu7x:2x2x1
jax: 0.10.0
libtpu: 0.0.40
codegen_flags: <defaults>
</compile_context>

<pallas_src>
import functools

import jax
import jax.numpy as jnp
from jax.experimental import pallas as pl
from jax.experimental.pallas import tpu as pltpu


ROW_TILE = 256  # row tile of A_hat once N exceeds this (streamed + double-buffered)


def _round_up(x, m):
    return ((x + m - 1) // m) * m


# ----------------------------- Pallas kernel -----------------------------

def fused_gcn_kernel(a_ref, x_ref, w1_ref, b1_ref, w2_ref, b2_ref,
                     w3_ref, b3_ref, p_ref, wo_ref, bo_ref, o_ref,
                     h1_ref, h2_ref, h3_ref, *, tm):
    """grid = (3 layers, R row tiles of A_hat).

    Per grid step (l, r):  h_l[rows r] = relu(A[rows r] @ h_{l-1} @ W_l + b_l).
    A row tiles are streamed (auto double-buffered by Pallas); X / weights / P
    are resident (constant index maps); h1/h2/h3 persist in VMEM scratch.
    Pool + final Linear run once, on the last grid step.
    """
    l = pl.program_id(0)
    r = pl.program_id(1)
    a = a_ref[...]                                    # [tm, N_pad] bf16 row tile
    row0 = pl.multiple_of(r * tm, tm)

    def layer(h_prev, w_ref, b_ref, h_out_ref):
        # (A @ h_prev) @ W, f32 accumulation on the MXU, bias + ReLU in f32.
        t = jnp.dot(a, h_prev, preferred_element_type=jnp.float32)
        h = jnp.dot(t.astype(jnp.bfloat16), w_ref[...],
                    preferred_element_type=jnp.float32) + b_ref[...]
        # dropout: identity (eval-mode semantics)
        h_out_ref[pl.ds(row0, tm), :] = jnp.maximum(h, 0.0).astype(jnp.bfloat16)

    @pl.when(l == 0)
    def _():
        layer(x_ref[...], w1_ref, b1_ref, h1_ref)

    @pl.when(l == 1)
    def _():
        layer(h1_ref[...], w2_ref, b2_ref, h2_ref)

    @pl.when(l == 2)
    def _():
        layer(h2_ref[...], w3_ref, b3_ref, h3_ref)

        @pl.when(r == pl.num_programs(1) - 1)
        def _():
            # global_mean_pool (P @ h3, bf16 inputs / f32 acc) + final Linear (f32, tiny)
            pooled = jnp.dot(p_ref[...], h3_ref[...],
                             preferred_element_type=jnp.float32)       # [G_pad, O]
            o_ref[...] = jnp.dot(pooled, wo_ref[...],
                                 preferred_element_type=jnp.float32) + bo_ref[...]


# ------------------------------ wrapper -----------------------------------

def _vmem_limit_bytes():
    """Generation-aware VMEM budget: ~85% of physical, capped at 110 MiB.

    v5e/v6e (128 MiB physical) -> ~108 MiB; v7x (64 MiB) -> ~54 MiB.
    """
    try:
        cap = pltpu.get_tpu_info().vmem_capacity_bytes
    except Exception:
        cap = 64 * 1024 * 1024  # conservative fallback (safe on every generation)
    return min(int(cap * 0.85), 110 * 1024 * 1024)


def gcn_forward(x, edge_index, batch, params, num_graphs):
    n, f_in = x.shape
    hidden = params["w1"].shape[1]
    out_dim = params["w_out_t"].shape[1]

    # --- pad node count (bf16 sublane alignment / row-tile divisibility) ---
    n_pad = _round_up(n, 16)
    if n_pad <= ROW_TILE:
        tm = n_pad                      # single row tile -> A resident (read once)
    else:
        n_pad = _round_up(n, ROW_TILE)
        tm = ROW_TILE                   # streamed row tiles, double-buffered
    r_tiles = n_pad // tm
    g_pad = _round_up(num_graphs, 8)

    a_hat = build_normalized_adjacency(edge_index, n)
    a_hat = jnp.pad(a_hat, ((0, n_pad - n), (0, n_pad - n))).astype(jnp.bfloat16)
    x_pad = jnp.pad(x, ((0, n_pad - n), (0, 0))).astype(jnp.bfloat16)
    pool_mat = build_pool_matrix(batch, num_graphs, n)
    pool_mat = jnp.pad(pool_mat,
                       ((0, g_pad - num_graphs), (0, n_pad - n))).astype(jnp.bfloat16)

    # Resident (constant-index, full-shape) specs vs. the streamed A row tile.
    def const(shape):
        return pl.BlockSpec(shape, lambda l, r: (0,) * len(shape))

    a_spec = pl.BlockSpec((tm, n_pad), lambda l, r: (r, 0))

    # Advisory cost estimate: FLOPs / bytes dominated by the N^2 A_hat term.
    flops = (2 * n_pad * n_pad * (f_in + 2 * hidden)
             + 2 * n_pad * (f_in * hidden + hidden * hidden + hidden * out_dim)
             + 2 * g_pad * n_pad * out_dim + 2 * g_pad * out_dim * out_dim)
    a_reads = 1 if r_tiles == 1 else 3   # resident vs. re-streamed per layer
    bytes_accessed = (a_reads * n_pad * n_pad * 2 + n_pad * f_in * 2
                      + g_pad * n_pad * 2
                      + (f_in * hidden + hidden * hidden + hidden * out_dim) * 2
                      + out_dim * out_dim * 4 + (1 + g_pad) * out_dim * 4)

    out = pl.pallas_call(
        functools.partial(fused_gcn_kernel, tm=tm),
        out_shape=jax.ShapeDtypeStruct((g_pad, out_dim), jnp.float32),
        grid_spec=pltpu.PrefetchScalarGridSpec(
            num_scalar_prefetch=0,
            grid=(3, r_tiles),
            in_specs=[
                a_spec,                              # A_hat row tiles (streamed)
                const((n_pad, f_in)),                # X (resident)
                const((f_in, hidden)), const((1, hidden)),     # W1, b1
                const((hidden, hidden)), const((1, hidden)),   # W2, b2
                const((hidden, out_dim)), const((1, out_dim)), # W3, b3
                const((g_pad, n_pad)),               # pool matrix P
                const((out_dim, out_dim)), const((1, out_dim)),  # W_out^T, b_out
            ],
            out_specs=pl.BlockSpec((g_pad, out_dim), lambda l, r: (0, 0)),
            scratch_shapes=[
                pltpu.VMEM((n_pad, hidden), jnp.bfloat16),   # h1
                pltpu.VMEM((n_pad, hidden), jnp.bfloat16),   # h2
                pltpu.VMEM((n_pad, out_dim), jnp.bfloat16),  # h3
            ]),
        compiler_params=pltpu.CompilerParams(
            dimension_semantics=("arbitrary", "arbitrary"),
            vmem_limit_bytes=_vmem_limit_bytes()),
        cost_estimate=pl.CostEstimate(flops=flops, transcendentals=0,
                                      bytes_accessed=bytes_accessed),
    )(
        a_hat, x_pad,
        params["w1"].astype(jnp.bfloat16), params["b1"].reshape(1, -1),
        params["w2"].astype(jnp.bfloat16), params["b2"].reshape(1, -1),
        params["w3"].astype(jnp.bfloat16), params["b3"].reshape(1, -1),
        pool_mat,
        params["w_out_t"], params["b_out"].reshape(1, -1),
    )
    return out[:num_graphs]


# ------------------------------ glue (plain JAX) ----------------------------

def build_normalized_adjacency(edge_index, num_nodes):
    """Dense A_hat = D^{-1/2}(A + I)D^{-1/2}  (GCNConv / gcn_norm)."""
    src, dst = edge_index[0], edge_index[1]
    a = jnp.zeros((num_nodes, num_nodes), jnp.float32)
    # message j -> i aggregated at row i; scatter-ADD so duplicate edges accumulate
    a = a.at[dst, src].add(1.0)
    a = a + jnp.eye(num_nodes, dtype=jnp.float32)          # add self loops
    deg = a.sum(axis=1)
    dinv = jnp.where(deg > 0, 1.0 / jnp.sqrt(deg), 0.0)
    return dinv[:, None] * a * dinv[None, :]


def build_pool_matrix(batch, num_graphs, num_nodes):
    """P[g, i] = 1/|graph g| if node i belongs to graph g (global_mean_pool)."""
    onehot = (batch[None, :] == jnp.arange(num_graphs)[:, None]).astype(jnp.float32)
    counts = jnp.maximum(onehot.sum(axis=1, keepdims=True), 1.0)
    return onehot / counts


# ------------------------------ main ----------------------------------------

if __name__ == "__main__":
    # Small shapes consistent with the module structure.
    NUM_FEATURES = 8
    NUM_HIDDEN = 32
    OUT_DIM = 16
    NUM_NODES = 16
    NUM_GRAPHS = 2

    key = jax.random.PRNGKey(0)
    k_x, k1, k2, k3, k4, kb = jax.random.split(key, 6)

    # Node features [N, F].
    x = jax.random.normal(k_x, (NUM_NODES, NUM_FEATURES), jnp.float32)

    # Two graphs of 8 nodes each, undirected ring within each graph.
    batch = jnp.concatenate([jnp.zeros(8, jnp.int32), jnp.ones(8, jnp.int32)])
    edges = []
    for g in range(NUM_GRAPHS):
        base = g * 8
        for i in range(8):
            a, b = base + i, base + (i + 1) % 8
            edges.append((a, b))
            edges.append((b, a))
    edge_index = jnp.array(edges, jnp.int32).T  # [2, E]

    def init_linear(k, fan_in, fan_out):
        # deterministic uniform init ~ PyTorch Linear default scale
        bound = 1.0 / (fan_in ** 0.5)
        return jax.random.uniform(k, (fan_in, fan_out), jnp.float32, -bound, bound)

    params = {
        "w1": init_linear(k1, NUM_FEATURES, NUM_HIDDEN),
        "b1": jnp.zeros((NUM_HIDDEN,), jnp.float32),
        "w2": init_linear(k2, NUM_HIDDEN, NUM_HIDDEN),
        "b2": jnp.zeros((NUM_HIDDEN,), jnp.float32),
        "w3": init_linear(k3, NUM_HIDDEN, OUT_DIM),
        "b3": jnp.zeros((OUT_DIM,), jnp.float32),
        # final nn.Linear(out_dim, out_dim): stored as W^T so kernel does x @ W^T + b
        "w_out_t": init_linear(k4, OUT_DIM, OUT_DIM),
        "b_out": jax.random.uniform(kb, (OUT_DIM,), jnp.float32,
                                    -1.0 / (OUT_DIM ** 0.5), 1.0 / (OUT_DIM ** 0.5)),
    }

    out = gcn_forward(x, edge_index, batch, params, NUM_GRAPHS)
    out = jax.block_until_ready(out)
    assert out.shape == (NUM_GRAPHS, OUT_DIM), out.shape
    assert bool(jnp.all(jnp.isfinite(out)))
    print("KERNEL_OK")
</pallas_src>

<mosaic_0001>
module attributes {stable_mosaic.version = 11 : i64} {
  func.func @fused_gcn_kernel(%arg0: i32, %arg1: i32, %arg2: memref<16x16xbf16, #tpu.memory_space<vmem>>, %arg3: memref<16x8xbf16, #tpu.memory_space<vmem>>, %arg4: memref<8x32xbf16, #tpu.memory_space<vmem>>, %arg5: memref<1x32xf32, #tpu.memory_space<vmem>>, %arg6: memref<32x32xbf16, #tpu.memory_space<vmem>>, %arg7: memref<1x32xf32, #tpu.memory_space<vmem>>, %arg8: memref<32x16xbf16, #tpu.memory_space<vmem>>, %arg9: memref<1x16xf32, #tpu.memory_space<vmem>>, %arg10: memref<8x16xbf16, #tpu.memory_space<vmem>>, %arg11: memref<16x16xf32, #tpu.memory_space<vmem>>, %arg12: memref<1x16xf32, #tpu.memory_space<vmem>>, %arg13: memref<8x16xf32, #tpu.memory_space<vmem>>, %arg14: memref<16x32xbf16, #tpu.memory_space<vmem>>, %arg15: memref<16x32xbf16, #tpu.memory_space<vmem>>, %arg16: memref<16x16xbf16, #tpu.memory_space<vmem>>) attributes {dimension_semantics = [#tpu.dimension_semantics<arbitrary>, #tpu.dimension_semantics<arbitrary>], iteration_bounds = array<i64: 3, 1>, scalar_prefetch = 0 : i64, scratch_operands = 3 : i64, tpu.core_type = #tpu.core_type<tc>, window_params = [{transform_indices = @transform_0, window_bounds = array<i64: 16, 16>}, {pipeline_mode = #tpu.pipeline_mode<synchronous>, transform_indices = @transform_1, window_bounds = array<i64: 16, 8>}, {pipeline_mode = #tpu.pipeline_mode<synchronous>, transform_indices = @transform_2, window_bounds = array<i64: 8, 32>}, {pipeline_mode = #tpu.pipeline_mode<synchronous>, transform_indices = @transform_3, window_bounds = array<i64: 1, 32>}, {pipeline_mode = #tpu.pipeline_mode<synchronous>, transform_indices = @transform_4, window_bounds = array<i64: 32, 32>}, {pipeline_mode = #tpu.pipeline_mode<synchronous>, transform_indices = @transform_5, window_bounds = array<i64: 1, 32>}, {pipeline_mode = #tpu.pipeline_mode<synchronous>, transform_indices = @transform_6, window_bounds = array<i64: 32, 16>}, {pipeline_mode = #tpu.pipeline_mode<synchronous>, transform_indices = @transform_7, window_bounds = array<i64: 1, 16>}, {pipeline_mode = #tpu.pipeline_mode<synchronous>, transform_indices = @transform_8, window_bounds = array<i64: 8, 16>}, {pipeline_mode = #tpu.pipeline_mode<synchronous>, transform_indices = @transform_9, window_bounds = array<i64: 16, 16>}, {pipeline_mode = #tpu.pipeline_mode<synchronous>, transform_indices = @transform_10, window_bounds = array<i64: 1, 16>}, {pipeline_mode = #tpu.pipeline_mode<synchronous>, transform_indices = @transform_11, window_bounds = array<i64: 8, 16>}]} {
    %c0 = arith.constant 0 : index
    %c0_0 = arith.constant 0 : index
    %0 = vector.load %arg2[%c0, %c0_0] : memref<16x16xbf16, #tpu.memory_space<vmem>>, vector<16x16xbf16>
    %c16_i32 = arith.constant 16 : i32
    %1 = arith.muli %arg1, %c16_i32 : i32
    %2 = tpu.assume_multiple %1, 16 : i32
    %c0_i32 = arith.constant 0 : i32
    %3 = arith.cmpi eq, %arg0, %c0_i32 : i32
    %4 = arith.extui %3 : i1 to i32
    %c0_i32_1 = arith.constant 0 : i32
    %5 = arith.cmpi ne, %4, %c0_i32_1 : i32
    scf.if %5 {
      %c0_4 = arith.constant 0 : index
      %c0_5 = arith.constant 0 : index
      %12 = vector.load %arg3[%c0_4, %c0_5] : memref<16x8xbf16, #tpu.memory_space<vmem>>, vector<16x8xbf16>
      %cst = arith.constant dense<0.000000e+00> : vector<16x8xf32>
      %13 = tpu.matmul %0, %12, %cst {dimension_numbers = #tpu.dot_dimension_numbers<[1], [0], [0], [1], [0, 0, 1, 1], [], []>} : vector<16x16xbf16>, vector<16x8xbf16>, vector<16x8xf32> -> vector<16x8xf32>
      %14 = arith.truncf %13 : vector<16x8xf32> to vector<16x8xbf16>
      %c0_6 = arith.constant 0 : index
      %c0_7 = arith.constant 0 : index
      %15 = vector.load %arg4[%c0_6, %c0_7] : memref<8x32xbf16, #tpu.memory_space<vmem>>, vector<8x32xbf16>
      %cst_8 = arith.constant dense<0.000000e+00> : vector<16x32xf32>
      %16 = tpu.matmul %14, %15, %cst_8 {dimension_numbers = #tpu.dot_dimension_numbers<[1], [0], [0], [1], [0, 0, 1, 1], [], []>} : vector<16x8xbf16>, vector<8x32xbf16>, vector<16x32xf32> -> vector<16x32xf32>
      %c0_9 = arith.constant 0 : index
      %c0_10 = arith.constant 0 : index
      %17 = vector.load %arg5[%c0_9, %c0_10] : memref<1x32xf32, #tpu.memory_space<vmem>>, vector<1x32xf32>
      %18 = vector.broadcast %17 : vector<1x32xf32> to vector<16x32xf32>
      %19 = arith.addf %16, %18 : vector<16x32xf32>
      %cst_11 = arith.constant 0.000000e+00 : f32
      %20 = vector.broadcast %cst_11 : f32 to vector<16x32xf32>
      %21 = arith.maximumf %19, %20 : vector<16x32xf32>
      %22 = arith.truncf %21 : vector<16x32xf32> to vector<16x32xbf16>
      %23 = arith.index_cast %2 : i32 to index
      %c0_12 = arith.constant 0 : index
      %24 = vector.load %arg14[%23, %c0_12] : memref<16x32xbf16, #tpu.memory_space<vmem>>, vector<16x32xbf16>
      tpu.vector_store %arg14[%23, %c0_12], %22 {strides = array<i32>} : memref<16x32xbf16, #tpu.memory_space<vmem>>, vector<16x32xbf16>,
    } else {
    }
    %c1_i32 = arith.constant 1 : i32
    %6 = arith.cmpi eq, %arg0, %c1_i32 : i32
    %7 = arith.extui %6 : i1 to i32
    %c0_i32_2 = arith.constant 0 : i32
    %8 = arith.cmpi ne, %7, %c0_i32_2 : i32
    scf.if %8 {
      %c0_4 = arith.constant 0 : index
      %c0_5 = arith.constant 0 : index
      %12 = vector.load %arg14[%c0_4, %c0_5] : memref<16x32xbf16, #tpu.memory_space<vmem>>, vector<16x32xbf16>
      %cst = arith.constant dense<0.000000e+00> : vector<16x32xf32>
      %13 = tpu.matmul %0, %12, %cst {dimension_numbers = #tpu.dot_dimension_numbers<[1], [0], [0], [1], [0, 0, 1, 1], [], []>} : vector<16x16xbf16>, vector<16x32xbf16>, vector<16x32xf32> -> vector<16x32xf32>
      %14 = arith.truncf %13 : vector<16x32xf32> to vector<16x32xbf16>
      %c0_6 = arith.constant 0 : index
      %c0_7 = arith.constant 0 : index
      %15 = vector.load %arg6[%c0_6, %c0_7] : memref<32x32xbf16, #tpu.memory_space<vmem>>, vector<32x32xbf16>
      %cst_8 = arith.constant dense<0.000000e+00> : vector<16x32xf32>
      %16 = tpu.matmul %14, %15, %cst_8 {dimension_numbers = #tpu.dot_dimension_numbers<[1], [0], [0], [1], [0, 0, 1, 1], [], []>} : vector<16x32xbf16>, vector<32x32xbf16>, vector<16x32xf32> -> vector<16x32xf32>
      %c0_9 = arith.constant 0 : index
      %c0_10 = arith.constant 0 : index
      %17 = vector.load %arg7[%c0_9, %c0_10] : memref<1x32xf32, #tpu.memory_space<vmem>>, vector<1x32xf32>
      %18 = vector.broadcast %17 : vector<1x32xf32> to vector<16x32xf32>
      %19 = arith.addf %16, %18 : vector<16x32xf32>
      %cst_11 = arith.constant 0.000000e+00 : f32
      %20 = vector.broadcast %cst_11 : f32 to vector<16x32xf32>
      %21 = arith.maximumf %19, %20 : vector<16x32xf32>
      %22 = arith.truncf %21 : vector<16x32xf32> to vector<16x32xbf16>
      %23 = arith.index_cast %2 : i32 to index
      %c0_12 = arith.constant 0 : index
      %24 = vector.load %arg15[%23, %c0_12] : memref<16x32xbf16, #tpu.memory_space<vmem>>, vector<16x32xbf16>
      tpu.vector_store %arg15[%23, %c0_12], %22 {strides = array<i32>} : memref<16x32xbf16, #tpu.memory_space<vmem>>, vector<16x32xbf16>,
    } else {
    }
    %c2_i32 = arith.constant 2 : i32
    %9 = arith.cmpi eq, %arg0, %c2_i32 : i32
    %10 = arith.extui %9 : i1 to i32
    %c0_i32_3 = arith.constant 0 : i32
    %11 = arith.cmpi ne, %10, %c0_i32_3 : i32
    scf.if %11 {
      %c0_4 = arith.constant 0 : index
      %c0_5 = arith.constant 0 : index
      %12 = vector.load %arg15[%c0_4, %c0_5] : memref<16x32xbf16, #tpu.memory_space<vmem>>, vector<16x32xbf16>
      %cst = arith.constant dense<0.000000e+00> : vector<16x32xf32>
      %13 = tpu.matmul %0, %12, %cst {dimension_numbers = #tpu.dot_dimension_numbers<[1], [0], [0], [1], [0, 0, 1, 1], [], []>} : vector<16x16xbf16>, vector<16x32xbf16>, vector<16x32xf32> -> vector<16x32xf32>
      %14 = arith.truncf %13 : vector<16x32xf32> to vector<16x32xbf16>
      %c0_6 = arith.constant 0 : index
      %c0_7 = arith.constant 0 : index
      %15 = vector.load %arg8[%c0_6, %c0_7] : memref<32x16xbf16, #tpu.memory_space<vmem>>, vector<32x16xbf16>
      %cst_8 = arith.constant dense<0.000000e+00> : vector<16x16xf32>
      %16 = tpu.matmul %14, %15, %cst_8 {dimension_numbers = #tpu.dot_dimension_numbers<[1], [0], [0], [1], [0, 0, 1, 1], [], []>} : vector<16x32xbf16>, vector<32x16xbf16>, vector<16x16xf32> -> vector<16x16xf32>
      %c0_9 = arith.constant 0 : index
      %c0_10 = arith.constant 0 : index
      %17 = vector.load %arg9[%c0_9, %c0_10] : memref<1x16xf32, #tpu.memory_space<vmem>>, vector<1x16xf32>
      %18 = vector.broadcast %17 : vector<1x16xf32> to vector<16x16xf32>
      %19 = arith.addf %16, %18 : vector<16x16xf32>
      %cst_11 = arith.constant 0.000000e+00 : f32
      %20 = vector.broadcast %cst_11 : f32 to vector<16x16xf32>
      %21 = arith.maximumf %19, %20 : vector<16x16xf32>
      %22 = arith.truncf %21 : vector<16x16xf32> to vector<16x16xbf16>
      %23 = arith.index_cast %2 : i32 to index
      %c0_12 = arith.constant 0 : index
      %24 = vector.load %arg16[%23, %c0_12] : memref<16x16xbf16, #tpu.memory_space<vmem>>, vector<16x16xbf16>
      tpu.vector_store %arg16[%23, %c0_12], %22 {strides = array<i32>} : memref<16x16xbf16, #tpu.memory_space<vmem>>, vector<16x16xbf16>,
      %c0_i32_13 = arith.constant 0 : i32
      %25 = arith.cmpi eq, %arg1, %c0_i32_13 : i32
      %26 = arith.extui %25 : i1 to i32
      %c0_i32_14 = arith.constant 0 : i32
      %27 = arith.cmpi ne, %26, %c0_i32_14 : i32
      scf.if %27 {
        %c0_15 = arith.constant 0 : index
        %c0_16 = arith.constant 0 : index
        %28 = vector.load %arg10[%c0_15, %c0_16] : memref<8x16xbf16, #tpu.memory_space<vmem>>, vector<8x16xbf16>
        %c0_17 = arith.constant 0 : index
        %c0_18 = arith.constant 0 : index
        %29 = vector.load %arg16[%c0_17, %c0_18] : memref<16x16xbf16, #tpu.memory_space<vmem>>, vector<16x16xbf16>
        %cst_19 = arith.constant dense<0.000000e+00> : vector<8x16xf32>
        %30 = tpu.matmul %28, %29, %cst_19 {dimension_numbers = #tpu.dot_dimension_numbers<[1], [0], [0], [1], [0, 0, 1, 1], [], []>} : vector<8x16xbf16>, vector<16x16xbf16>, vector<8x16xf32> -> vector<8x16xf32>
        %c0_20 = arith.constant 0 : index
        %c0_21 = arith.constant 0 : index
        %31 = vector.load %arg11[%c0_20, %c0_21] : memref<16x16xf32, #tpu.memory_space<vmem>>, vector<16x16xf32>
        %cst_22 = arith.constant dense<0.000000e+00> : vector<8x16xf32>
        %32 = tpu.matmul %30, %31, %cst_22 {dimension_numbers = #tpu.dot_dimension_numbers<[1], [0], [0], [1], [0, 0, 1, 1], [], []>} : vector<8x16xf32>, vector<16x16xf32>, vector<8x16xf32> -> vector<8x16xf32>
        %c0_23 = arith.constant 0 : index
        %c0_24 = arith.constant 0 : index
        %33 = vector.load %arg12[%c0_23, %c0_24] : memref<1x16xf32, #tpu.memory_space<vmem>>, vector<1x16xf32>
        %34 = vector.broadcast %33 : vector<1x16xf32> to vector<8x16xf32>
        %35 = arith.addf %32, %34 : vector<8x16xf32>
        %c0_25 = arith.constant 0 : index
        %c0_26 = arith.constant 0 : index
        %36 = vector.load %arg13[%c0_25, %c0_26] : memref<8x16xf32, #tpu.memory_space<vmem>>, vector<8x16xf32>
        tpu.vector_store %arg13[%c0_25, %c0_26], %35 {strides = array<i32>} : memref<8x16xf32, #tpu.memory_space<vmem>>, vector<8x16xf32>,
      } else {
      }
    } else {
    }
    return
  }
  func.func @transform_0(%arg0: i32, %arg1: i32) -> (i32, i32) {
    %c0_i32 = arith.constant 0 : i32
    %c0_i32_0 = arith.constant 0 : i32
    return %arg1, %c0_i32 : i32, i32
  }
  func.func @transform_1(%arg0: i32, %arg1: i32) -> (i32, i32) {
    %c0_i32 = arith.constant 0 : i32
    %c0_i32_0 = arith.constant 0 : i32
    %c0_i32_1 = arith.constant 0 : i32
    return %c0_i32, %c0_i32_0 : i32, i32
  }
  func.func @transform_2(%arg0: i32, %arg1: i32) -> (i32, i32) {
    %c0_i32 = arith.constant 0 : i32
    %c0_i32_0 = arith.constant 0 : i32
    %c0_i32_1 = arith.constant 0 : i32
    return %c0_i32, %c0_i32_0 : i32, i32
  }
  func.func @transform_3(%arg0: i32, %arg1: i32) -> (i32, i32) {
    %c0_i32 = arith.constant 0 : i32
    %c0_i32_0 = arith.constant 0 : i32
    %c0_i32_1 = arith.constant 0 : i32
    return %c0_i32, %c0_i32_0 : i32, i32
  }
  func.func @transform_4(%arg0: i32, %arg1: i32) -> (i32, i32) {
    %c0_i32 = arith.constant 0 : i32
    %c0_i32_0 = arith.constant 0 : i32
    %c0_i32_1 = arith.constant 0 : i32
    return %c0_i32, %c0_i32_0 : i32, i32
  }
  func.func @transform_5(%arg0: i32, %arg1: i32) -> (i32, i32) {
    %c0_i32 = arith.constant 0 : i32
    %c0_i32_0 = arith.constant 0 : i32
    %c0_i32_1 = arith.constant 0 : i32
    return %c0_i32, %c0_i32_0 : i32, i32
  }
  func.func @transform_6(%arg0: i32, %arg1: i32) -> (i32, i32) {
    %c0_i32 = arith.constant 0 : i32
    %c0_i32_0 = arith.constant 0 : i32
    %c0_i32_1 = arith.constant 0 : i32
    return %c0_i32, %c0_i32_0 : i32, i32
  }
  func.func @transform_7(%arg0: i32, %arg1: i32) -> (i32, i32) {
    %c0_i32 = arith.constant 0 : i32
    %c0_i32_0 = arith.constant 0 : i32
    %c0_i32_1 = arith.constant 0 : i32
    return %c0_i32, %c0_i32_0 : i32, i32
  }
  func.func @transform_8(%arg0: i32, %arg1: i32) -> (i32, i32) {
    %c0_i32 = arith.constant 0 : i32
    %c0_i32_0 = arith.constant 0 : i32
    %c0_i32_1 = arith.constant 0 : i32
    return %c0_i32, %c0_i32_0 : i32, i32
  }
  func.func @transform_9(%arg0: i32, %arg1: i32) -> (i32, i32) {
    %c0_i32 = arith.constant 0 : i32
    %c0_i32_0 = arith.constant 0 : i32
    %c0_i32_1 = arith.constant 0 : i32
    return %c0_i32, %c0_i32_0 : i32, i32
  }
  func.func @transform_10(%arg0: i32, %arg1: i32) -> (i32, i32) {
    %c0_i32 = arith.constant 0 : i32
    %c0_i32_0 = arith.constant 0 : i32
    %c0_i32_1 = arith.constant 0 : i32
    return %c0_i32, %c0_i32_0 : i32, i32
  }
  func.func @transform_11(%arg0: i32, %arg1: i32) -> (i32, i32) {
    %c0_i32 = arith.constant 0 : i32
    %c0_i32_0 = arith.constant 0 : i32
    %c0_i32_1 = arith.constant 0 : i32
    return %c0_i32, %c0_i32_0 : i32, i32
  }
}

</mosaic_0001>

<llo_original>
// kernel: tpu_custom_call.1
$region0: #{tpu_custom_call.1}
  #allocation0 [shape = 'u32[]', space=smem, size = 0x4, offset = 0x4, fixed_abs, tag = 'smem constant byte address 0x4 - core index']
  #allocation1 [shape = 'u32[144,128]{1,0:T(1,128)}', space=vmem, size = 0x12000, scoped, tag = 'internal scratch']
  #allocation2 [shape = 'bf16[16,32]{1,0:T(16,128)(2,1)}', space=vmem, size = 0x1000, scoped, tag = 'scratch operand']
  #allocation3 [shape = 'bf16[16,32]{1,0:T(16,128)(2,1)}', space=vmem, size = 0x1000, scoped, tag = 'scratch operand']
  #allocation4 [shape = 'bf16[16,16]{1,0:T(16,128)(2,1)}', space=vmem, size = 0x1000, scoped, tag = 'scratch operand']
  %s0 = inlined_call_operand.hbm [shape: bf16[16,16], index: 0, kind: input, shape index: {}]
  %s1 = inlined_call_operand.vmem [shape: bf16[16,8], index: 1, kind: input, shape index: {}]
  %s2 = inlined_call_operand.hbm [shape: bf16[8,32], index: 2, kind: input, shape index: {}]
  %s3 = inlined_call_operand.vmem [shape: f32[1,32], index: 3, kind: input, shape index: {}]
  %s4 = inlined_call_operand.vmem [shape: bf16[32,32], index: 4, kind: input, shape index: {}]
  %s5 = inlined_call_operand.vmem [shape: f32[1,32], index: 5, kind: input, shape index: {}]
  %s6 = inlined_call_operand.vmem [shape: bf16[32,16], index: 6, kind: input, shape index: {}]
  %s7 = inlined_call_operand.vmem [shape: f32[1,16], index: 7, kind: input, shape index: {}]
  %s8 = inlined_call_operand.vmem [shape: bf16[8,16], index: 8, kind: input, shape index: {}]
  %s9 = inlined_call_operand.vmem [shape: f32[16,16], index: 9, kind: input, shape index: {}]
  %s10 = inlined_call_operand.vmem [shape: f32[1,16], index: 10, kind: input, shape index: {}]
  %s11 = inlined_call_operand.hbm [shape: f32[8,16], index: 11, kind: output, shape index: {}]
  %s12 = sld [smem:[#allocation0]]
  $region101: #{tpu_custom_call.1} parent=0
    _
  %s14 = ssub.s32 1, %s12
  %s15 = scalar_select 0, %s14, %s12
  $region1: #{tpu_custom_call.1} parent=0
    #allocation5 [shape = 'u8[4096]{0}', space=vmem, size = 0x1000, scoped, tag = 'input window, operand 0, single buffered']
    #allocation6 [shape = 's32[2]{0}', space=sflag, size = 0x8, scoped, tag = 'scoped memory for tpu_custom_call.1']
    #allocation7 [shape = 's32[2]{0}', space=sflag, size = 0x8, scoped, tag = 'scoped memory for tpu_custom_call.1']
    #allocation8 [shape = 'u8[2048]{0}', space=vmem, size = 0x800, scoped, tag = 'input window, operand 2, single buffered']
    #allocation9 [shape = 's32[1]{0}', space=sflag, size = 0x4, scoped, tag = 'scoped memory for tpu_custom_call.1']
    #allocation10 [shape = 'u8[4096]{0}', space=vmem, size = 0x1000, scoped, tag = 'output window, operand 0, single buffered']
    %16 = vsyncpa [#allocation6], 0
    %17 = vsyncpa [#allocation9], 0
    %18 = vsyncpa [#allocation7], 0
    loop: start=0, step=1, limit=5
    $region2: #{tpu_custom_call.1} parent=1 // loop_pre_header
      _
    $region3: #{tpu_custom_call.1} parent=1 // loop_header
      %s20 = sphi 0, %s24
      %p21 = scmp.ge.s32.totalorder %s20, 5
      %s27 = sphi 0, %s39
      %s28 = sphi 0, %s35
      %s29 = sphi 0, %s27
      %s30 = sphi 0, %s28
      %s31 = sphi 0, %s29
      %s32 = sphi 0, %s30
      %s42 = sphi 0, %s44
      %s45 = sphi 0, %s42
      %s46 = sphi 0, %s45
      %s62 = sphi 0, %s46
      %s66 = sphi 0, %s66
      %s68 = sphi 0, %s66
      %s69 = sphi 0, %s68
      %s83 = sphi 0, %s69
      %s87 = sphi 0, %s87
      %s89 = sphi 0, %s87
      %s90 = sphi 0, %s89
      %s104 = sphi 0, %s90
      %s108 = sphi 0, %s108
      %s110 = sphi 0, %s108
      %s111 = sphi 0, %s110
      %s125 = sphi 0, %s111
      %s129 = sphi 0, %s129
      %s131 = sphi 0, %s129
      %s132 = sphi 0, %s131
      %s146 = sphi 0, %s132
      %s150 = sphi 0, %s150
      %s152 = sphi 0, %s150
      %s153 = sphi 0, %s152
      %s167 = sphi 0, %s153
      %s171 = sphi 0, %s171
      %s173 = sphi 0, %s171
      %s174 = sphi 0, %s173
      %s188 = sphi 0, %s174
      %s192 = sphi 0, %s192
      %s194 = sphi 0, %s192
      %s195 = sphi 0, %s194
      %s209 = sphi 0, %s195
      %s213 = sphi 0, %s213
      %s215 = sphi 0, %s213
      %s216 = sphi 0, %s215
      %s230 = sphi 0, %s216
      %s234 = sphi 0, %s234
      %s236 = sphi 0, %s234
      %s237 = sphi 0, %s236
      %s251 = sphi 0, %s237
      %s255 = sphi 0, %s255
      %s257 = sphi 0, %s255
      %s258 = sphi 0, %s257
      %s272 = sphi 0, %s258
      %s276 = sphi 0, %s276
      %s278 = sphi 0, %s276
      %s279 = sphi 0, %s278
      %s293 = sphi 0, %s279
    $region4: #{tpu_custom_call.1} parent=1 // loop_header_branch
      %23 = sbr.rel (%p21) target = $region8
    $region5: #{tpu_custom_call.1} parent=1 // loop_body
      %s25 = ssub.s32 %s20, 1
      %s26 = ssub.s32 %s20, 2
      %s33 = sadd.s32 1, %s28
      %p34 = scmp.ge.s32.totalorder %s33, 1
      %s35 = scalar_select %p34, 0, %s33
      %s36 = sadd.s32 1, %s27
      %s37 = scalar_select %p34, %s36, %s27
      %p38 = scmp.ge.s32.totalorder %s37, 3
      %s39 = scalar_select %p38, 0, %s37
      %s40 = ssub.s32 %s28, %s35
      %p41 = scmp.eq.s32.totalorder %s40, 0
      %s43 = sadd.s32 %s42, 1
      %s44 = scalar_select %p41, %s42, %s43
      %p47 = pneg %p41
      %p48 = scmp.eq.s32.totalorder %s20, 2
      %p49 = por %p47, %p48
      %p50 = scmp.ne.s32.totalorder %s42, %s45
      %p51 = scmp.eq.s32.totalorder %s20, 0
      %p52 = por %p50, %p51
      %p53 = scmp.ne.s32.totalorder %s42, %s45
      %p54 = scmp.eq.s32.totalorder %s25, 2
      %p55 = por %p53, %p54
      %p56 = scmp.ne.s32.totalorder %s45, %s46
      %p57 = scmp.eq.s32.totalorder %s25, 0
      %p58 = por %p56, %p57
      %p59 = scmp.ne.s32.totalorder %s45, %s46
      %p60 = scmp.eq.s32.totalorder %s26, 2
      %p61 = por %p59, %p60
      %p63 = scmp.ne.s32.totalorder %s46, %s62
      %p64 = scmp.eq.s32.totalorder %s26, 0
      %p65 = por %p63, %p64
      %s67 = sadd.s32 %s66, 1
      %p70 = scmp.eq.s32.totalorder %s20, 2
      %p71 = scmp.ne.s32.totalorder %s66, %s68
      %p72 = scmp.eq.s32.totalorder %s20, 0
      %p73 = por %p71, %p72
      %p74 = scmp.ne.s32.totalorder %s66, %s68
      %p75 = scmp.eq.s32.totalorder %s25, 2
      %p76 = por %p74, %p75
      %p77 = scmp.ne.s32.totalorder %s68, %s69
      %p78 = scmp.eq.s32.totalorder %s25, 0
      %p79 = por %p77, %p78
      %p80 = scmp.ne.s32.totalorder %s68, %s69
      %p81 = scmp.eq.s32.totalorder %s26, 2
      %p82 = por %p80, %p81
      %p84 = scmp.ne.s32.totalorder %s69, %s83
      %p85 = scmp.eq.s32.totalorder %s26, 0
      %p86 = por %p84, %p85
      %s88 = sadd.s32 %s87, 1
      %p91 = scmp.eq.s32.totalorder %s20, 2
      %p92 = scmp.ne.s32.totalorder %s87, %s89
      %p93 = scmp.eq.s32.totalorder %s20, 0
      %p94 = por %p92, %p93
      %p95 = scmp.ne.s32.totalorder %s87, %s89
      %p96 = scmp.eq.s32.totalorder %s25, 2
      %p97 = por %p95, %p96
      %p98 = scmp.ne.s32.totalorder %s89, %s90
      %p99 = scmp.eq.s32.totalorder %s25, 0
      %p100 = por %p98, %p99
      %p101 = scmp.ne.s32.totalorder %s89, %s90
      %p102 = scmp.eq.s32.totalorder %s26, 2
      %p103 = por %p101, %p102
      %p105 = scmp.ne.s32.totalorder %s90, %s104
      %p106 = scmp.eq.s32.totalorder %s26, 0
      %p107 = por %p105, %p106
      %s109 = sadd.s32 %s108, 1
      %p112 = scmp.eq.s32.totalorder %s20, 2
      %p113 = scmp.ne.s32.totalorder %s108, %s110
      %p114 = scmp.eq.s32.totalorder %s20, 0
      %p115 = por %p113, %p114
      %p116 = scmp.ne.s32.totalorder %s108, %s110
      %p117 = scmp.eq.s32.totalorder %s25, 2
      %p118 = por %p116, %p117
      %p119 = scmp.ne.s32.totalorder %s110, %s111
      %p120 = scmp.eq.s32.totalorder %s25, 0
      %p121 = por %p119, %p120
      %p122 = scmp.ne.s32.totalorder %s110, %s111
      %p123 = scmp.eq.s32.totalorder %s26, 2
      %p124 = por %p122, %p123
      %p126 = scmp.ne.s32.totalorder %s111, %s125
      %p127 = scmp.eq.s32.totalorder %s26, 0
      %p128 = por %p126, %p127
      %s130 = sadd.s32 %s129, 1
      %p133 = scmp.eq.s32.totalorder %s20, 2
      %p134 = scmp.ne.s32.totalorder %s129, %s131
      %p135 = scmp.eq.s32.totalorder %s20, 0
      %p136 = por %p134, %p135
      %p137 = scmp.ne.s32.totalorder %s129, %s131
      %p138 = scmp.eq.s32.totalorder %s25, 2
      %p139 = por %p137, %p138
      %p140 = scmp.ne.s32.totalorder %s131, %s132
      %p141 = scmp.eq.s32.totalorder %s25, 0
      %p142 = por %p140, %p141
      %p143 = scmp.ne.s32.totalorder %s131, %s132
      %p144 = scmp.eq.s32.totalorder %s26, 2
      %p145 = por %p143, %p144
      %p147 = scmp.ne.s32.totalorder %s132, %s146
      %p148 = scmp.eq.s32.totalorder %s26, 0
      %p149 = por %p147, %p148
      %s151 = sadd.s32 %s150, 1
      %p154 = scmp.eq.s32.totalorder %s20, 2
      %p155 = scmp.ne.s32.totalorder %s150, %s152
      %p156 = scmp.eq.s32.totalorder %s20, 0
      %p157 = por %p155, %p156
      %p158 = scmp.ne.s32.totalorder %s150, %s152
      %p159 = scmp.eq.s32.totalorder %s25, 2
      %p160 = por %p158, %p159
      %p161 = scmp.ne.s32.totalorder %s152, %s153
      %p162 = scmp.eq.s32.totalorder %s25, 0
      %p163 = por %p161, %p162
      %p164 = scmp.ne.s32.totalorder %s152, %s153
      %p165 = scmp.eq.s32.totalorder %s26, 2
      %p166 = por %p164, %p165
      %p168 = scmp.ne.s32.totalorder %s153, %s167
      %p169 = scmp.eq.s32.totalorder %s26, 0
      %p170 = por %p168, %p169
      %s172 = sadd.s32 %s171, 1
      %p175 = scmp.eq.s32.totalorder %s20, 2
      %p176 = scmp.ne.s32.totalorder %s171, %s173
      %p177 = scmp.eq.s32.totalorder %s20, 0
      %p178 = por %p176, %p177
      %p179 = scmp.ne.s32.totalorder %s171, %s173
      %p180 = scmp.eq.s32.totalorder %s25, 2
      %p181 = por %p179, %p180
      %p182 = scmp.ne.s32.totalorder %s173, %s174
      %p183 = scmp.eq.s32.totalorder %s25, 0
      %p184 = por %p182, %p183
      %p185 = scmp.ne.s32.totalorder %s173, %s174
      %p186 = scmp.eq.s32.totalorder %s26, 2
      %p187 = por %p185, %p186
      %p189 = scmp.ne.s32.totalorder %s174, %s188
      %p190 = scmp.eq.s32.totalorder %s26, 0
      %p191 = por %p189, %p190
      %s193 = sadd.s32 %s192, 1
      %p196 = scmp.eq.s32.totalorder %s20, 2
      %p197 = scmp.ne.s32.totalorder %s192, %s194
      %p198 = scmp.eq.s32.totalorder %s20, 0
      %p199 = por %p197, %p198
      %p200 = scmp.ne.s32.totalorder %s192, %s194
      %p201 = scmp.eq.s32.totalorder %s25, 2
      %p202 = por %p200, %p201
      %p203 = scmp.ne.s32.totalorder %s194, %s195
      %p204 = scmp.eq.s32.totalorder %s25, 0
      %p205 = por %p203, %p204
      %p206 = scmp.ne.s32.totalorder %s194, %s195
      %p207 = scmp.eq.s32.totalorder %s26, 2
      %p208 = por %p206, %p207
      %p210 = scmp.ne.s32.totalorder %s195, %s209
      %p211 = scmp.eq.s32.totalorder %s26, 0
      %p212 = por %p210, %p211
      %s214 = sadd.s32 %s213, 1
      %p217 = scmp.eq.s32.totalorder %s20, 2
      %p218 = scmp.ne.s32.totalorder %s213, %s215
      %p219 = scmp.eq.s32.totalorder %s20, 0
      %p220 = por %p218, %p219
      %p221 = scmp.ne.s32.totalorder %s213, %s215
      %p222 = scmp.eq.s32.totalorder %s25, 2
      %p223 = por %p221, %p222
      %p224 = scmp.ne.s32.totalorder %s215, %s216
      %p225 = scmp.eq.s32.totalorder %s25, 0
      %p226 = por %p224, %p225
      %p227 = scmp.ne.s32.totalorder %s215, %s216
      %p228 = scmp.eq.s32.totalorder %s26, 2
      %p229 = por %p227, %p228
      %p231 = scmp.ne.s32.totalorder %s216, %s230
      %p232 = scmp.eq.s32.totalorder %s26, 0
      %p233 = por %p231, %p232
      %s235 = sadd.s32 %s234, 1
      %p238 = scmp.eq.s32.totalorder %s20, 2
      %p239 = scmp.ne.s32.totalorder %s234, %s236
      %p240 = scmp.eq.s32.totalorder %s20, 0
      %p241 = por %p239, %p240
      %p242 = scmp.ne.s32.totalorder %s234, %s236
      %p243 = scmp.eq.s32.totalorder %s25, 2
      %p244 = por %p242, %p243
      %p245 = scmp.ne.s32.totalorder %s236, %s237
      %p246 = scmp.eq.s32.totalorder %s25, 0
      %p247 = por %p245, %p246
      %p248 = scmp.ne.s32.totalorder %s236, %s237
      %p249 = scmp.eq.s32.totalorder %s26, 2
      %p250 = por %p248, %p249
      %p252 = scmp.ne.s32.totalorder %s237, %s251
      %p253 = scmp.eq.s32.totalorder %s26, 0
      %p254 = por %p252, %p253
      %s256 = sadd.s32 %s255, 1
      %p259 = scmp.eq.s32.totalorder %s20, 2
      %p260 = scmp.ne.s32.totalorder %s255, %s257
      %p261 = scmp.eq.s32.totalorder %s20, 0
      %p262 = por %p260, %p261
      %p263 = scmp.ne.s32.totalorder %s255, %s257
      %p264 = scmp.eq.s32.totalorder %s25, 2
      %p265 = por %p263, %p264
      %p266 = scmp.ne.s32.totalorder %s257, %s258
      %p267 = scmp.eq.s32.totalorder %s25, 0
      %p268 = por %p266, %p267
      %p269 = scmp.ne.s32.totalorder %s257, %s258
      %p270 = scmp.eq.s32.totalorder %s26, 2
      %p271 = por %p269, %p270
      %p273 = scmp.ne.s32.totalorder %s258, %s272
      %p274 = scmp.eq.s32.totalorder %s26, 0
      %p275 = por %p273, %p274
      %s277 = sadd.s32 %s276, 1
      %p280 = scmp.eq.s32.totalorder %s20, 2
      %p281 = scmp.ne.s32.totalorder %s276, %s278
      %p282 = scmp.eq.s32.totalorder %s20, 0
      %p283 = por %p281, %p282
      %p284 = scmp.ne.s32.totalorder %s276, %s278
      %p285 = scmp.eq.s32.totalorder %s25, 2
      %p286 = por %p284, %p285
      %p287 = scmp.ne.s32.totalorder %s278, %s279
      %p288 = scmp.eq.s32.totalorder %s25, 0
      %p289 = por %p287, %p288
      %p290 = scmp.ne.s32.totalorder %s278, %s279
      %p291 = scmp.eq.s32.totalorder %s26, 2
      %p292 = por %p290, %p291
      %p294 = scmp.ne.s32.totalorder %s279, %s293
      %p295 = scmp.eq.s32.totalorder %s26, 0
      %p296 = por %p294, %p295
      %p297 = scmp.le.s32.totalorder 1, %s20
      %p298 = scmp.lt.s32.totalorder %s20, 4
      %p299 = pnand %p297, %p298
      %p300 = pneg %p299
      // Predicated region
      $region9: #{tpu_custom_call.1} parent=5 // pred_check
        _
      $region10: #{tpu_custom_call.1} parent=5 // pred_check_branch
        %302 = sbr.rel (%p299) target = $region12
      $region11: #{tpu_custom_call.1} parent=5 // pred_region
        %s303 = ssub.s32 %s20, 1
        // Predicated region
        $region13: #{tpu_custom_call.1} parent=11 // pred_check
          %p304 = pneg %p58
        $region14: #{tpu_custom_call.1} parent=11 // pred_check_branch
          %306 = sbr.rel (%p304) target = $region16
        $region15: #{tpu_custom_call.1} parent=11 // pred_region
          %s307 = smul.u32 2, %s30
          %s309 = ssub.s32 128, 128
          %310 = vsyncadd [#allocation6], %s309
          %s311 = smul.addr %s307, 64
          %s312 = scalar_lea.hbm %s0, %s311
          %s313 = sshll.u32 [#allocation5], 4
          %s314 = int_to_ptr.vmem [resolvable:$true] %s313
          %319 = dma.hbm_to_vmem [thread:$0]  %s312, 128, %s314, [#allocation6], 64, 64, 4
        $region16: #{tpu_custom_call.1} parent=11 // pred_fallthru
          _
        // Predicated region
        $region17: #{tpu_custom_call.1} parent=11 // pred_check
          %p320 = pneg %p79
        $region18: #{tpu_custom_call.1} parent=11 // pred_check_branch
          %322 = sbr.rel (%p320) target = $region20
        $region19: #{tpu_custom_call.1} parent=11 // pred_region
          _
        $region20: #{tpu_custom_call.1} parent=11 // pred_fallthru
          _
        // Predicated region
        $region21: #{tpu_custom_call.1} parent=11 // pred_check
          %p323 = pneg %p100
        $region22: #{tpu_custom_call.1} parent=11 // pred_check_branch
          %325 = sbr.rel (%p323) target = $region24
        $region23: #{tpu_custom_call.1} parent=11 // pred_region
          %s327 = ssub.s32 64, 64
          %328 = vsyncadd [#allocation9], %s327
          %s330 = sshll.u32 [#allocation8], 4
          %s331 = int_to_ptr.vmem [resolvable:$true] %s330
          %333 = dma.hbm_to_vmem [thread:$0]  %s2, 64, %s331, [#allocation9]
        $region24: #{tpu_custom_call.1} parent=11 // pred_fallthru
          _
        // Predicated region
        $region25: #{tpu_custom_call.1} parent=11 // pred_check
          %p334 = pneg %p121
        $region26: #{tpu_custom_call.1} parent=11 // pred_check_branch
          %336 = sbr.rel (%p334) target = $region28
        $region27: #{tpu_custom_call.1} parent=11 // pred_region
          _
        $region28: #{tpu_custom_call.1} parent=11 // pred_fallthru
          _
        // Predicated region
        $region29: #{tpu_custom_call.1} parent=11 // pred_check
          %p337 = pneg %p142
        $region30: #{tpu_custom_call.1} parent=11 // pred_check_branch
          %339 = sbr.rel (%p337) target = $region32
        $region31: #{tpu_custom_call.1} parent=11 // pred_region
          _
        $region32: #{tpu_custom_call.1} parent=11 // pred_fallthru
          _
        // Predicated region
        $region33: #{tpu_custom_call.1} parent=11 // pred_check
          %p340 = pneg %p163
        $region34: #{tpu_custom_call.1} parent=11 // pred_check_branch
          %342 = sbr.rel (%p340) target = $region36
        $region35: #{tpu_custom_call.1} parent=11 // pred_region
          _
        $region36: #{tpu_custom_call.1} parent=11 // pred_fallthru
          _
        // Predicated region
        $region37: #{tpu_custom_call.1} parent=11 // pred_check
          %p343 = pneg %p184
        $region38: #{tpu_custom_call.1} parent=11 // pred_check_branch
          %345 = sbr.rel (%p343) target = $region40
        $region39: #{tpu_custom_call.1} parent=11 // pred_region
          _
        $region40: #{tpu_custom_call.1} parent=11 // pred_fallthru
          _
        // Predicated region
        $region41: #{tpu_custom_call.1} parent=11 // pred_check
          %p346 = pneg %p205
        $region42: #{tpu_custom_call.1} parent=11 // pred_check_branch
          %348 = sbr.rel (%p346) target = $region44
        $region43: #{tpu_custom_call.1} parent=11 // pred_region
          _
        $region44: #{tpu_custom_call.1} parent=11 // pred_fallthru
          _
        // Predicated region
        $region45: #{tpu_custom_call.1} parent=11 // pred_check
          %p349 = pneg %p226
        $region46: #{tpu_custom_call.1} parent=11 // pred_check_branch
          %351 = sbr.rel (%p349) target = $region48
        $region47: #{tpu_custom_call.1} parent=11 // pred_region
          _
        $region48: #{tpu_custom_call.1} parent=11 // pred_fallthru
          _
        // Predicated region
        $region49: #{tpu_custom_call.1} parent=11 // pred_check
          %p352 = pneg %p247
        $region50: #{tpu_custom_call.1} parent=11 // pred_check_branch
          %354 = sbr.rel (%p352) target = $region52
        $region51: #{tpu_custom_call.1} parent=11 // pred_region
          _
        $region52: #{tpu_custom_call.1} parent=11 // pred_fallthru
          _
        // Predicated region
        $region53: #{tpu_custom_call.1} parent=11 // pred_check
          %p355 = pneg %p268
        $region54: #{tpu_custom_call.1} parent=11 // pred_check_branch
          %357 = sbr.rel (%p355) target = $region56
        $region55: #{tpu_custom_call.1} parent=11 // pred_region
          _
        $region56: #{tpu_custom_call.1} parent=11 // pred_fallthru
          _
      $region12: #{tpu_custom_call.1} parent=5 // pred_fallthru
        _
      %p358 = scmp.lt.s32.totalorder %s20, 3
      // Predicated region
      $region57: #{tpu_custom_call.1} parent=5 // pred_check
        %p359 = pneg %p358
      $region58: #{tpu_custom_call.1} parent=5 // pred_check_branch
        %361 = sbr.rel (%p359) target = $region60
      $region59: #{tpu_custom_call.1} parent=5 // pred_region
        _
      $region60: #{tpu_custom_call.1} parent=5 // pred_fallthru
        _
      %p362 = scmp.le.s32.totalorder 1, %s20
      %p363 = scmp.lt.s32.totalorder %s20, 4
      %p364 = pnand %p362, %p363
      %p365 = pneg %p364
      // Predicated region
      $region61: #{tpu_custom_call.1} parent=5 // pred_check
        _
      $region62: #{tpu_custom_call.1} parent=5 // pred_check_branch
        %367 = sbr.rel (%p364) target = $region64
      $region63: #{tpu_custom_call.1} parent=5 // pred_region
        %s368 = ssub.s32 %s20, 1
        // Predicated region
        $region65: #{tpu_custom_call.1} parent=63 // pred_check
          %p369 = pneg %p58
        $region66: #{tpu_custom_call.1} parent=63 // pred_check_branch
          %371 = sbr.rel (%p369) target = $region68
        $region67: #{tpu_custom_call.1} parent=63 // pred_region
          %372 = dma.done [#allocation6], 128
        $region68: #{tpu_custom_call.1} parent=63 // pred_fallthru
          _
        // Predicated region
        $region69: #{tpu_custom_call.1} parent=63 // pred_check
          %p373 = pneg %p100
        $region70: #{tpu_custom_call.1} parent=63 // pred_check_branch
          %375 = sbr.rel (%p373) target = $region72
        $region71: #{tpu_custom_call.1} parent=63 // pred_region
          %376 = dma.done [#allocation9], 64
        $region72: #{tpu_custom_call.1} parent=63 // pred_fallthru
          _
        %p377 = pneg %p58
        %p378 = pneg %p55
        %p379 = pneg %p79
        %p380 = pneg %p76
        %p381 = pneg %p100
        %p382 = pneg %p97
        %p383 = pneg %p121
        %p384 = pneg %p118
        %p385 = pneg %p142
        %p386 = pneg %p139
        %p387 = pneg %p163
        %p388 = pneg %p160
        %p389 = pneg %p184
        %p390 = pneg %p181
        %p391 = pneg %p205
        %p392 = pneg %p202
        %p393 = pneg %p226
        %p394 = pneg %p223
        %p395 = pneg %p247
        %p396 = pneg %p244
        %p397 = pneg %p268
        %p398 = pneg %p265
        %p399 = pneg %p289
        %p400 = pneg %p286
        %s401 = smul.u32 2, %s30
        %v403 = vld [vmem:[#allocation5] sm:$0xf]
        %v404 = vld [vmem:[#allocation5 + $0x4] sm:$0xf]
        %s405 = smul.u32 %s30, 16
        %p406 = scmp.eq.s32.totalorder %s29, 0
        // Predicated region
        $region73: #{tpu_custom_call.1} parent=63 // pred_check
          %p407 = pneg %p406
        $region74: #{tpu_custom_call.1} parent=63 // pred_check_branch
          %409 = sbr.rel (%p407) target = $region76
        $region75: #{tpu_custom_call.1} parent=63 // pred_region
          %v410 = vld [vmem:[%s1] sm:$0xf]
          %v411 = vld [vmem:[%s1 + $0x4] sm:$0xf]
          %v414 = vunpack.c.l.b16 %v403
          %v415 = vunpack.c.l.b16 %v404
          %v416 = vpack.c.b16 %v415, %v414
          %v419 = vunpack.c.l.b16 %v410
          %v420 = vunpack.c.l.b16 %v411
          %v421 = vpack.c.b16 %v420, %v419
          %vm423 = vcmask 130048
          %v425 = vsel %vm423, %v416, 0
          %427 = vmatprep.subr.bf16.mxu0 0
          %428 = vmatpush1.bf16.msra.mxu0 %v421
          %429 = vmatprep.subr.bf16.mxu0 0
          %430 = vmatpush1.bf16.msra.mxu0 0
          %431 = vmatprep.subr.bf16.mxu0 0
          %432 = vmatpush1.bf16.msra.mxu0 0
          %433 = vmatprep.subr.bf16.mxu0 0
          %434 = vmatpush1.bf16.msra.mxu0 0
          %435 = vmatprep.subr.bf16.mxu0 0
          %436 = vmatpush1.bf16.msra.mxu0 0
          %437 = vmatprep.subr.bf16.mxu0 0
          %438 = vmatpush1.bf16.msra.mxu0 0
          %439 = vmatprep.subr.bf16.mxu0 0
          %440 = vmatpush1.bf16.msra.mxu0 0
          %441 = vmatprep.subr.bf16.mxu0 0
          %442 = vmatpush1.bf16.msra.mxu0 0
          %443 = vmatprep.subr.bf16.mxu0 0
          %444 = vmatpush1.bf16.msra.mxu0 0
          %445 = vmatprep.subr.bf16.mxu0 0
          %446 = vmatpush1.bf16.msra.mxu0 0
          %447 = vmatprep.subr.bf16.mxu0 0
          %448 = vmatpush1.bf16.msra.mxu0 0
          %449 = vmatprep.subr.bf16.mxu0 0
          %450 = vmatpush1.bf16.msra.mxu0 0
          %451 = vmatprep.subr.bf16.mxu0 0
          %452 = vmatpush1.bf16.msra.mxu0 0
          %453 = vmatprep.subr.bf16.mxu0 0
          %454 = vmatpush1.bf16.msra.mxu0 0
          %455 = vmatprep.subr.bf16.mxu0 0
          %456 = vmatpush1.bf16.msra.mxu0 0
          %457 = vmatprep.subr.bf16.mxu0 0
          %458 = vmatpush1.bf16.msra.mxu0 0
          %459 = vmatprep.mubr.bf16.mxu0 0
          %460 = vmatmul.mubr.bf16.gmra.mrb[0].mxu0 %v425
          %v461 = vpop.f32.mrb[0].mxu0
          %v462 = vadd.f32 0.0, %v461
          %v463 = vpop.f32.mrb[0].mxu0
          %v464 = vpop.f32.mrb[0].mxu0
          %v465 = vadd.f32 0.0, %v464
          %v466 = vpop.f32.mrb[0].mxu0
          %467 = vdwg.mxu0
          %v468 = vpack.c.bf16 %v465, %v462
          %v469 = vld [vmem:[#allocation8] sm:$0xf]
          %v470 = vld [vmem:[%s3] sm:$0x1]
          %v472 = vlaneseq
          %v473 = vshrl.u32 %v472, 7
          %v474 = vsub.s32 0, %v473
          %v475 = vrot.slane %v470, %v474
          %vm477 = vcmask 64512
          %v479 = vsel %vm477, %v468, 0
          %vm481 = vcmask 1043456
          %v483 = vsel %vm481, %v469, 0
          %485 = vmatprep.subr.bf16.mxu0 0
          %486 = vmatpush1.bf16.msra.mxu0 %v483
          %487 = vmatprep.subr.bf16.mxu0 0
          %488 = vmatpush1.bf16.msra.mxu0 0
          %489 = vmatprep.subr.bf16.mxu0 0
          %490 = vmatpush1.bf16.msra.mxu0 0
          %491 = vmatprep.subr.bf16.mxu0 0
          %492 = vmatpush1.bf16.msra.mxu0 0
          %493 = vmatprep.subr.bf16.mxu0 0
          %494 = vmatpush1.bf16.msra.mxu0 0
          %495 = vmatprep.subr.bf16.mxu0 0
          %496 = vmatpush1.bf16.msra.mxu0 0
          %497 = vmatprep.subr.bf16.mxu0 0
          %498 = vmatpush1.bf16.msra.mxu0 0
          %499 = vmatprep.subr.bf16.mxu0 0
          %500 = vmatpush1.bf16.msra.mxu0 0
          %501 = vmatprep.subr.bf16.mxu0 0
          %502 = vmatpush1.bf16.msra.mxu0 0
          %503 = vmatprep.subr.bf16.mxu0 0
          %504 = vmatpush1.bf16.msra.mxu0 0
          %505 = vmatprep.subr.bf16.mxu0 0
          %506 = vmatpush1.bf16.msra.mxu0 0
          %507 = vmatprep.subr.bf16.mxu0 0
          %508 = vmatpush1.bf16.msra.mxu0 0
          %509 = vmatprep.subr.bf16.mxu0 0
          %510 = vmatpush1.bf16.msra.mxu0 0
          %511 = vmatprep.subr.bf16.mxu0 0
          %512 = vmatpush1.bf16.msra.mxu0 0
          %513 = vmatprep.subr.bf16.mxu0 0
          %514 = vmatpush1.bf16.msra.mxu0 0
          %515 = vmatprep.subr.bf16.mxu0 0
          %516 = vmatpush1.bf16.msra.mxu0 0
          %517 = vmatprep.mubr.bf16.mxu0 0
          %518 = vmatmul.mubr.bf16.gmra.mrb[0].mxu0 %v479
          %v519 = vpop.f32.mrb[0].mxu0
          %v520 = vadd.f32 %v475, %v519
          %v521 = vpop.f32.mrb[0].mxu0
          %v522 = vpop.f32.mrb[0].mxu0
          %v523 = vadd.f32 %v475, %v522
          %v524 = vpop.f32.mrb[0].mxu0
          %525 = vdwg.mxu0
          %v526 = vmax.f32 %v520, 0.0
          %v527 = vmax.f32 %v523, 0.0
          %v528 = vpack.c.bf16 %v527, %v526
          %s529 = sshra.s32 %s405, 4
          %s530 = sand.u32 %s405, 15
          %s531 = smul.addr %s529, 8
          %s532 = scalar_lea.vmem [#allocation2], %s531
          %vm533 = vcmask 261120
          %534 = vst.msk [vmem:[%s532] sm:$0xff] %vm533, %v528
        $region76: #{tpu_custom_call.1} parent=63 // pred_fallthru
          _
        %p535 = scmp.eq.s32.totalorder %s29, 1
        // Predicated region
        $region77: #{tpu_custom_call.1} parent=63 // pred_check
          %p536 = pneg %p535
        $region78: #{tpu_custom_call.1} parent=63 // pred_check_branch
          %538 = sbr.rel (%p536) target = $region80
        $region79: #{tpu_custom_call.1} parent=63 // pred_region
          %v539 = vld [vmem:[#allocation2] sm:$0xff]
          %v542 = vunpack.c.l.b16 %v403
          %v543 = vunpack.c.l.b16 %v404
          %v544 = vpack.c.b16 %v543, %v542
          %vm545 = vcmask 130048
          %v547 = vsel %vm545, %v544, 0
          %549 = vmatprep.subr.bf16.mxu0 0
          %550 = vmatpush1.bf16.msra.mxu0 %v539
          %551 = vmatprep.subr.bf16.mxu0 0
          %552 = vmatpush1.bf16.msra.mxu0 0
          %553 = vmatprep.subr.bf16.mxu0 0
          %554 = vmatpush1.bf16.msra.mxu0 0
          %555 = vmatprep.subr.bf16.mxu0 0
          %556 = vmatpush1.bf16.msra.mxu0 0
          %557 = vmatprep.subr.bf16.mxu0 0
          %558 = vmatpush1.bf16.msra.mxu0 0
          %559 = vmatprep.subr.bf16.mxu0 0
          %560 = vmatpush1.bf16.msra.mxu0 0
          %561 = vmatprep.subr.bf16.mxu0 0
          %562 = vmatpush1.bf16.msra.mxu0 0
          %563 = vmatprep.subr.bf16.mxu0 0
          %564 = vmatpush1.bf16.msra.mxu0 0
          %565 = vmatprep.subr.bf16.mxu0 0
          %566 = vmatpush1.bf16.msra.mxu0 0
          %567 = vmatprep.subr.bf16.mxu0 0
          %568 = vmatpush1.bf16.msra.mxu0 0
          %569 = vmatprep.subr.bf16.mxu0 0
          %570 = vmatpush1.bf16.msra.mxu0 0
          %571 = vmatprep.subr.bf16.mxu0 0
          %572 = vmatpush1.bf16.msra.mxu0 0
          %573 = vmatprep.subr.bf16.mxu0 0
          %574 = vmatpush1.bf16.msra.mxu0 0
          %575 = vmatprep.subr.bf16.mxu0 0
          %576 = vmatpush1.bf16.msra.mxu0 0
          %577 = vmatprep.subr.bf16.mxu0 0
          %578 = vmatpush1.bf16.msra.mxu0 0
          %579 = vmatprep.subr.bf16.mxu0 0
          %580 = vmatpush1.bf16.msra.mxu0 0
          %581 = vmatprep.mubr.bf16.mxu0 0
          %582 = vmatmul.mubr.bf16.gmra.mrb[0].mxu0 %v547
          %v583 = vpop.f32.mrb[0].mxu0
          %v584 = vadd.f32 0.0, %v583
          %v585 = vpop.f32.mrb[0].mxu0
          %v586 = vpop.f32.mrb[0].mxu0
          %v587 = vadd.f32 0.0, %v586
          %v588 = vpop.f32.mrb[0].mxu0
          %589 = vdwg.mxu0
          %v590 = vpack.c.bf16 %v587, %v584
          %v591 = vld [vmem:[%s4] sm:$0xf]
          %v592 = vld [vmem:[%s4 + $0x4] sm:$0xf]
          %v593 = vld [vmem:[%s4 + $0x8] sm:$0xf]
          %v594 = vld [vmem:[%s4 + $0xc] sm:$0xf]
          %v595 = vld [vmem:[%s5] sm:$0x1]
          %v597 = vlaneseq
          %v598 = vshrl.u32 %v597, 7
          %v599 = vsub.s32 0, %v598
          %v600 = vrot.slane %v595, %v599
          %v606 = vunpack.c.l.b16 %v591
          %v607 = vunpack.c.l.b16 %v592
          %v608 = vunpack.c.l.b16 %v593
          %v609 = vunpack.c.l.b16 %v594
          %v610 = vpack.c.b16 %v607, %v606
          %v611 = vpack.c.b16 %v609, %v608
          %vm614 = vcmask 261120
          %v616 = vsel %vm614, %v590, 0
          %618 = vmatprep.subr.bf16.mxu0 0
          %619 = vmatpush1.bf16.msra.mxu0 %v610
          %620 = vmatprep.subr.bf16.mxu0 0
          %621 = vmatpush1.bf16.msra.mxu0 %v611
          %622 = vmatprep.subr.bf16.mxu0 0
          %623 = vmatpush1.bf16.msra.mxu0 0
          %624 = vmatprep.subr.bf16.mxu0 0
          %625 = vmatpush1.bf16.msra.mxu0 0
          %626 = vmatprep.subr.bf16.mxu0 0
          %627 = vmatpush1.bf16.msra.mxu0 0
          %628 = vmatprep.subr.bf16.mxu0 0
          %629 = vmatpush1.bf16.msra.mxu0 0
          %630 = vmatprep.subr.bf16.mxu0 0
          %631 = vmatpush1.bf16.msra.mxu0 0
          %632 = vmatprep.subr.bf16.mxu0 0
          %633 = vmatpush1.bf16.msra.mxu0 0
          %634 = vmatprep.subr.bf16.mxu0 0
          %635 = vmatpush1.bf16.msra.mxu0 0
          %636 = vmatprep.subr.bf16.mxu0 0
          %637 = vmatpush1.bf16.msra.mxu0 0
          %638 = vmatprep.subr.bf16.mxu0 0
          %639 = vmatpush1.bf16.msra.mxu0 0
          %640 = vmatprep.subr.bf16.mxu0 0
          %641 = vmatpush1.bf16.msra.mxu0 0
          %642 = vmatprep.subr.bf16.mxu0 0
          %643 = vmatpush1.bf16.msra.mxu0 0
          %644 = vmatprep.subr.bf16.mxu0 0
          %645 = vmatpush1.bf16.msra.mxu0 0
          %646 = vmatprep.subr.bf16.mxu0 0
          %647 = vmatpush1.bf16.msra.mxu0 0
          %648 = vmatprep.subr.bf16.mxu0 0
          %649 = vmatpush1.bf16.msra.mxu0 0
          %650 = vmatprep.mubr.bf16.mxu0 0
          %651 = vmatmul.mubr.bf16.gmra.mrb[0].mxu0 %v616
          %v652 = vpop.f32.mrb[0].mxu0
          %v653 = vadd.f32 %v600, %v652
          %v654 = vpop.f32.mrb[0].mxu0
          %v655 = vpop.f32.mrb[0].mxu0
          %v656 = vadd.f32 %v600, %v655
          %v657 = vpop.f32.mrb[0].mxu0
          %658 = vdwg.mxu0
          %v659 = vmax.f32 %v653, 0.0
          %v660 = vmax.f32 %v656, 0.0
          %v661 = vpack.c.bf16 %v660, %v659
          %s662 = sshra.s32 %s405, 4
          %s663 = sand.u32 %s405, 15
          %s664 = smul.addr %s662, 8
          %s665 = scalar_lea.vmem [#allocation3], %s664
          %666 = vst.msk [vmem:[%s665] sm:$0xff] %vm614, %v661
        $region80: #{tpu_custom_call.1} parent=63 // pred_fallthru
          _
        %p667 = scmp.eq.s32.totalorder %s29, 2
        // Predicated region
        $region81: #{tpu_custom_call.1} parent=63 // pred_check
          %p668 = pneg %p667
        $region82: #{tpu_custom_call.1} parent=63 // pred_check_branch
          %670 = sbr.rel (%p668) target = $region84
        $region83: #{tpu_custom_call.1} parent=63 // pred_region
          %v671 = vld [vmem:[#allocation3] sm:$0xff]
          %v674 = vunpack.c.l.b16 %v403
          %v675 = vunpack.c.l.b16 %v404
          %v676 = vpack.c.b16 %v675, %v674
          %vm677 = vcmask 130048
          %v679 = vsel %vm677, %v676, 0
          %681 = vmatprep.subr.bf16.mxu0 0
          %682 = vmatpush1.bf16.msra.mxu0 %v671
          %683 = vmatprep.subr.bf16.mxu0 0
          %684 = vmatpush1.bf16.msra.mxu0 0
          %685 = vmatprep.subr.bf16.mxu0 0
          %686 = vmatpush1.bf16.msra.mxu0 0
          %687 = vmatprep.subr.bf16.mxu0 0
          %688 = vmatpush1.bf16.msra.mxu0 0
          %689 = vmatprep.subr.bf16.mxu0 0
          %690 = vmatpush1.bf16.msra.mxu0 0
          %691 = vmatprep.subr.bf16.mxu0 0
          %692 = vmatpush1.bf16.msra.mxu0 0
          %693 = vmatprep.subr.bf16.mxu0 0
          %694 = vmatpush1.bf16.msra.mxu0 0
          %695 = vmatprep.subr.bf16.mxu0 0
          %696 = vmatpush1.bf16.msra.mxu0 0
          %697 = vmatprep.subr.bf16.mxu0 0
          %698 = vmatpush1.bf16.msra.mxu0 0
          %699 = vmatprep.subr.bf16.mxu0 0
          %700 = vmatpush1.bf16.msra.mxu0 0
          %701 = vmatprep.subr.bf16.mxu0 0
          %702 = vmatpush1.bf16.msra.mxu0 0
          %703 = vmatprep.subr.bf16.mxu0 0
          %704 = vmatpush1.bf16.msra.mxu0 0
          %705 = vmatprep.subr.bf16.mxu0 0
          %706 = vmatpush1.bf16.msra.mxu0 0
          %707 = vmatprep.subr.bf16.mxu0 0
          %708 = vmatpush1.bf16.msra.mxu0 0
          %709 = vmatprep.subr.bf16.mxu0 0
          %710 = vmatpush1.bf16.msra.mxu0 0
          %711 = vmatprep.subr.bf16.mxu0 0
          %712 = vmatpush1.bf16.msra.mxu0 0
          %713 = vmatprep.mubr.bf16.mxu0 0
          %714 = vmatmul.mubr.bf16.gmra.mrb[0].mxu0 %v679
          %v715 = vpop.f32.mrb[0].mxu0
          %v716 = vadd.f32 0.0, %v715
          %v717 = vpop.f32.mrb[0].mxu0
          %v718 = vpop.f32.mrb[0].mxu0
          %v719 = vadd.f32 0.0, %v718
          %v720 = vpop.f32.mrb[0].mxu0
          %721 = vdwg.mxu0
          %v722 = vpack.c.bf16 %v719, %v716
          %v723 = vld [vmem:[%s6] sm:$0xf]
          %v724 = vld [vmem:[%s6 + $0x4] sm:$0xf]
          %v725 = vld [vmem:[%s6 + $0x8] sm:$0xf]
          %v726 = vld [vmem:[%s6 + $0xc] sm:$0xf]
          %v727 = vld [vmem:[%s7] sm:$0x1]
          %v729 = vlaneseq
          %v730 = vshrl.u32 %v729, 7
          %v731 = vsub.s32 0, %v730
          %v732 = vrot.slane %v727, %v731
          %v738 = vunpack.c.l.b16 %v723
          %v739 = vunpack.c.l.b16 %v724
          %v740 = vunpack.c.l.b16 %v725
          %v741 = vunpack.c.l.b16 %v726
          %v742 = vpack.c.b16 %v739, %v738
          %v743 = vpack.c.b16 %v741, %v740
          %vm746 = vcmask 261120
          %v748 = vsel %vm746, %v722, 0
          %750 = vmatprep.subr.bf16.mxu0 0
          %751 = vmatpush1.bf16.msra.mxu0 %v742
          %752 = vmatprep.subr.bf16.mxu0 0
          %753 = vmatpush1.bf16.msra.mxu0 %v743
          %754 = vmatprep.subr.bf16.mxu0 0
          %755 = vmatpush1.bf16.msra.mxu0 0
          %756 = vmatprep.subr.bf16.mxu0 0
          %757 = vmatpush1.bf16.msra.mxu0 0
          %758 = vmatprep.subr.bf16.mxu0 0
          %759 = vmatpush1.bf16.msra.mxu0 0
          %760 = vmatprep.subr.bf16.mxu0 0
          %761 = vmatpush1.bf16.msra.mxu0 0
          %762 = vmatprep.subr.bf16.mxu0 0
          %763 = vmatpush1.bf16.msra.mxu0 0
          %764 = vmatprep.subr.bf16.mxu0 0
          %765 = vmatpush1.bf16.msra.mxu0 0
          %766 = vmatprep.subr.bf16.mxu0 0
          %767 = vmatpush1.bf16.msra.mxu0 0
          %768 = vmatprep.subr.bf16.mxu0 0
          %769 = vmatpush1.bf16.msra.mxu0 0
          %770 = vmatprep.subr.bf16.mxu0 0
          %771 = vmatpush1.bf16.msra.mxu0 0
          %772 = vmatprep.subr.bf16.mxu0 0
          %773 = vmatpush1.bf16.msra.mxu0 0
          %774 = vmatprep.subr.bf16.mxu0 0
          %775 = vmatpush1.bf16.msra.mxu0 0
          %776 = vmatprep.subr.bf16.mxu0 0
          %777 = vmatpush1.bf16.msra.mxu0 0
          %778 = vmatprep.subr.bf16.mxu0 0
          %779 = vmatpush1.bf16.msra.mxu0 0
          %780 = vmatprep.subr.bf16.mxu0 0
          %781 = vmatpush1.bf16.msra.mxu0 0
          %782 = vmatprep.mubr.bf16.mxu0 0
          %783 = vmatmul.mubr.bf16.gmra.mrb[0].mxu0 %v748
          %v784 = vpop.f32.mrb[0].mxu0
          %v785 = vadd.f32 %v732, %v784
          %v786 = vpop.f32.mrb[0].mxu0
          %v787 = vpop.f32.mrb[0].mxu0
          %v788 = vadd.f32 %v732, %v787
          %v789 = vpop.f32.mrb[0].mxu0
          %790 = vdwg.mxu0
          %v791 = vmax.f32 %v785, 0.0
          %v792 = vmax.f32 %v788, 0.0
          %v793 = vpack.c.bf16 %v792, %v791
          %s794 = sshra.s32 %s405, 4
          %s795 = sand.u32 %s405, 15
          %s796 = smul.addr %s794, 8
          %s797 = scalar_lea.vmem [#allocation4], %s796
          %798 = vst.msk [vmem:[%s797] sm:$0xff] %vm677, %v793
          %p799 = scmp.eq.s32.totalorder %s30, 0
          // Predicated region
          $region85: #{tpu_custom_call.1} parent=83 // pred_check
            %p800 = pneg %p799
          $region86: #{tpu_custom_call.1} parent=83 // pred_check_branch
            %802 = sbr.rel (%p800) target = $region88
          $region87: #{tpu_custom_call.1} parent=83 // pred_region
            %v803 = vld [vmem:[%s8] sm:$0xf]
            %v804 = vld [vmem:[#allocation4] sm:$0xff]
            %v806 = vsel %vm677, %v803, 0
            %808 = vmatprep.subr.bf16.mxu0 0
            %809 = vmatpush1.bf16.msra.mxu0 %v804
            %810 = vmatprep.subr.bf16.mxu0 0
            %811 = vmatpush1.bf16.msra.mxu0 0
            %812 = vmatprep.subr.bf16.mxu0 0
            %813 = vmatpush1.bf16.msra.mxu0 0
            %814 = vmatprep.subr.bf16.mxu0 0
            %815 = vmatpush1.bf16.msra.mxu0 0
            %816 = vmatprep.subr.bf16.mxu0 0
            %817 = vmatpush1.bf16.msra.mxu0 0
            %818 = vmatprep.subr.bf16.mxu0 0
            %819 = vmatpush1.bf16.msra.mxu0 0
            %820 = vmatprep.subr.bf16.mxu0 0
            %821 = vmatpush1.bf16.msra.mxu0 0
            %822 = vmatprep.subr.bf16.mxu0 0
            %823 = vmatpush1.bf16.msra.mxu0 0
            %824 = vmatprep.subr.bf16.mxu0 0
            %825 = vmatpush1.bf16.msra.mxu0 0
            %826 = vmatprep.subr.bf16.mxu0 0
            %827 = vmatpush1.bf16.msra.mxu0 0
            %828 = vmatprep.subr.bf16.mxu0 0
            %829 = vmatpush1.bf16.msra.mxu0 0
            %830 = vmatprep.subr.bf16.mxu0 0
            %831 = vmatpush1.bf16.msra.mxu0 0
            %832 = vmatprep.subr.bf16.mxu0 0
            %833 = vmatpush1.bf16.msra.mxu0 0
            %834 = vmatprep.subr.bf16.mxu0 0
            %835 = vmatpush1.bf16.msra.mxu0 0
            %836 = vmatprep.subr.bf16.mxu0 0
            %837 = vmatpush1.bf16.msra.mxu0 0
            %838 = vmatprep.subr.bf16.mxu0 0
            %839 = vmatpush1.bf16.msra.mxu0 0
            %840 = vmatprep.mubr.bf16.mxu0 0
            %841 = vmatmul.mubr.bf16.gmra.mrb[0].mxu0 %v806
            %v842 = vpop.f32.mrb[0].mxu0
            %v843 = vadd.f32 0.0, %v842
            %v844 = vpop.f32.mrb[0].mxu0
            %v845 = vpop.f32.mrb[0].mxu0
            %v846 = vpop.f32.mrb[0].mxu0
            %847 = vdwg.mxu0
            %v848 = vld [vmem:[%s9] sm:$0xff]
            %v849 = vld [vmem:[%s9 + $0x8] sm:$0xff]
            %v850 = vld [vmem:[%s10] sm:$0x1]
            %v852 = vlaneseq
            %v853 = vshrl.u32 %v852, 7
            %v854 = vsub.s32 0, %v853
            %v855 = vrot.slane %v850, %v854
            %v858 = vsel %vm677, %v843, 0
            %860 = vmatprep.subr.mxu0 0.0
            %861 = vmatpush1.msra.mxu0 %v848
            %862 = vmatprep.subr.mxu0 0.0
            %863 = vmatpush1.msra.mxu0 %v849
            %864 = vmatprep.subr.mxu0 0.0
            %865 = vmatpush1.msra.mxu0 0.0
            %866 = vmatprep.subr.mxu0 0.0
            %867 = vmatpush1.msra.mxu0 0.0
            %868 = vmatprep.subr.mxu0 0.0
            %869 = vmatpush1.msra.mxu0 0.0
            %870 = vmatprep.subr.mxu0 0.0
            %871 = vmatpush1.msra.mxu0 0.0
            %872 = vmatprep.subr.mxu0 0.0
            %873 = vmatpush1.msra.mxu0 0.0
            %874 = vmatprep.subr.mxu0 0.0
            %875 = vmatpush1.msra.mxu0 0.0
            %876 = vmatprep.subr.mxu0 0.0
            %877 = vmatpush1.msra.mxu0 0.0
            %878 = vmatprep.subr.mxu0 0.0
            %879 = vmatpush1.msra.mxu0 0.0
            %880 = vmatprep.subr.mxu0 0.0
            %881 = vmatpush1.msra.mxu0 0.0
            %882 = vmatprep.subr.mxu0 0.0
            %883 = vmatpush1.msra.mxu0 0.0
            %884 = vmatprep.subr.mxu0 0.0
            %885 = vmatpush1.msra.mxu0 0.0
            %886 = vmatprep.subr.mxu0 0.0
            %887 = vmatpush1.msra.mxu0 0.0
            %888 = vmatprep.subr.mxu0 0.0
            %889 = vmatpush1.msra.mxu0 0.0
            %890 = vmatprep.subr.mxu0 0.0
            %891 = vmatpush1.msra.mxu0 0.0
            %892 = vmatprep.subr.mxu0 0.0
            %893 = vmatpush1.msra.mxu0 0.0
            %894 = vmatprep.subr.mxu0 0.0
            %895 = vmatpush1.msra.mxu0 0.0
            %896 = vmatprep.subr.mxu0 0.0
            %897 = vmatpush1.msra.mxu0 0.0
            %898 = vmatprep.subr.mxu0 0.0
            %899 = vmatpush1.msra.mxu0 0.0
            %900 = vmatprep.subr.mxu0 0.0
            %901 = vmatpush1.msra.mxu0 0.0
            %902 = vmatprep.subr.mxu0 0.0
            %903 = vmatpush1.msra.mxu0 0.0
            %904 = vmatprep.subr.mxu0 0.0
            %905 = vmatpush1.msra.mxu0 0.0
            %906 = vmatprep.subr.mxu0 0.0
            %907 = vmatpush1.msra.mxu0 0.0
            %908 = vmatprep.subr.mxu0 0.0
            %909 = vmatpush1.msra.mxu0 0.0
            %910 = vmatprep.subr.mxu0 0.0
            %911 = vmatpush1.msra.mxu0 0.0
            %912 = vmatprep.subr.mxu0 0.0
            %913 = vmatpush1.msra.mxu0 0.0
            %914 = vmatprep.subr.mxu0 0.0
            %915 = vmatpush1.msra.mxu0 0.0
            %916 = vmatprep.subr.mxu0 0.0
            %917 = vmatpush1.msra.mxu0 0.0
            %918 = vmatprep.subr.mxu0 0.0
            %919 = vmatpush1.msra.mxu0 0.0
            %920 = vmatprep.subr.mxu0 0.0
            %921 = vmatpush1.msra.mxu0 0.0
            %922 = vmatprep.subr.mxu0 0.0
            %923 = vmatpush1.msra.mxu0 0.0
            %924 = vmatprep.mubr.f32.mxu0 0.0
            %925 = vmatmul.mubr.f32.gmra.mrb[0].mxu0 %v858
            %v926 = vpop.f32.mrb[0].mxu0
            %v927 = vadd.f32 %v855, %v926
            %v928 = vpop.f32.mrb[0].mxu0
            %929 = vdwg.mxu0
            %930 = vst.msk [vmem:[#allocation10] sm:$0xff] %vm677, %v927
          $region88: #{tpu_custom_call.1} parent=83 // pred_fallthru
            _
        $region84: #{tpu_custom_call.1} parent=63 // pred_fallthru
          _
        // Predicated region
        $region89: #{tpu_custom_call.1} parent=63 // pred_check
          %p931 = pneg %p286
        $region90: #{tpu_custom_call.1} parent=63 // pred_check_branch
          %933 = sbr.rel (%p931) target = $region92
        $region91: #{tpu_custom_call.1} parent=63 // pred_region
          %s935 = ssub.s32 128, 128
          %936 = vsyncadd [#allocation7], %s935
          %s938 = sshll.u32 [#allocation10], 4
          %s939 = int_to_ptr.vmem [resolvable:$true] %s938
          %941 = dma.vmem_to_hbm [thread:$0]  %s939, 128, %s11, [#allocation7]
        $region92: #{tpu_custom_call.1} parent=63 // pred_fallthru
          _
        // Predicated region
        $region93: #{tpu_custom_call.1} parent=63 // pred_check
          %p942 = pneg %p286
        $region94: #{tpu_custom_call.1} parent=63 // pred_check_branch
          %944 = sbr.rel (%p942) target = $region96
        $region95: #{tpu_custom_call.1} parent=63 // pred_region
          %945 = dma.done [#allocation7], 128
        $region96: #{tpu_custom_call.1} parent=63 // pred_fallthru
          _
      $region64: #{tpu_custom_call.1} parent=5 // pred_fallthru
        _
      %p946 = scmp.le.s32.totalorder 2, %s20
      // Predicated region
      $region97: #{tpu_custom_call.1} parent=5 // pred_check
        %p947 = pneg %p946
      $region98: #{tpu_custom_call.1} parent=5 // pred_check_branch
        %949 = sbr.rel (%p947) target = $region100
      $region99: #{tpu_custom_call.1} parent=5 // pred_region
        %s950 = ssub.s32 %s20, 2
      $region100: #{tpu_custom_call.1} parent=5 // pred_fallthru
        _
    $region6: #{tpu_custom_call.1} parent=1 // loop_footer
      %s24 = sadd.s32 1, %s20
    $region7: #{tpu_custom_call.1} parent=1 // loop_footer_branch
      %19 = sbr.rel target = $region3
    $region8: #{tpu_custom_call.1} parent=1 // loop_exit
      _
    %951 = vsyncpa [#allocation6], 1
    %s952 = scalar_lea.sflag [#allocation6], 1
    %953 = vsyncpa %s952, 1
    %954 = vsyncpa [#allocation9], 1
    %955 = vsyncpa [#allocation7], 1
    %s956 = scalar_lea.sflag [#allocation7], 1
    %957 = vsyncpa %s956, 1

</llo_original>
